<compile_context>
chip_gen: v5e
topology: v5e:2x2
jax: 0.10.0
libtpu: 0.0.40
codegen_flags: <defaults>
</compile_context>

<pallas_src>
import jax
import jax.numpy as jnp
from jax.experimental import pallas as pl
from jax.experimental.pallas import tpu as pltpu


_LANES = 128      # TPU lane width; output is written lane-dense and sliced
_SUBLANES = 16    # row granularity safe for both f32 and bf16 tiles


def _round_up(n: int, m: int) -> int:
    return ((n + m - 1) // m) * m


def _mlp_head_kernel(x_ref, w1_ref, b1_ref, w2_ref, b2_ref, w3_ref, b3_ref, o_ref):
    """Fused 3-layer MLP on one (batch_tile, F) tile.

    x/w1/w2 may be bf16 (MXU feed); accumulation, bias adds and ReLU are f32.
    The final Linear(E->1) runs on the VPU/XLU (multiply + lane reduce) instead
    of an N=1 MXU matmul; its single column is replicated across 128 lanes so
    the output store is an unmasked, lane-dense vst.
    """
    # encoder layer 1: Linear(F -> 256) + bias + ReLU (f32 accumulate)
    h = jnp.dot(x_ref[...], w1_ref[...], preferred_element_type=jnp.float32)
    h = jnp.maximum(h + b1_ref[...], 0.0)

    # encoder layer 2: Linear(256 -> E) + bias (f32 accumulate)
    e = jnp.dot(h.astype(w2_ref.dtype), w2_ref[...],
                preferred_element_type=jnp.float32)
    e = e + b2_ref[...]

    # head: Linear(E -> 1) as VPU multiply + lane reduce; scalar bias from SMEM.
    y = jnp.sum(e * w3_ref[...], axis=-1, keepdims=True) + b3_ref[0]

    # lane-dense write: replicate the result column across all 128 lanes;
    # the wrapper slices column 0.
    o_ref[...] = jnp.broadcast_to(y, o_ref.shape).astype(o_ref.dtype)


def encoder_with_head(x, w1, b1, w2, b2, w3, b3, *, batch_tile=256,
                      compute_dtype=jnp.bfloat16):
    """x: (B, F) float32. Weights as (in_features, out_features). Returns (B, 1) f32.

    batch_tile: rows per grid step (default 256; shrinks automatically for
    small batches, and arbitrary B is handled by zero padding).
    compute_dtype: dtype fed to the two big MXU matmuls; f32 accumulation is
    always kept. bf16 roughly quadruples MXU throughput on v6e/v7x.
    """
    B, F = x.shape
    H = w1.shape[1]             # 256
    E = w2.shape[1]             # embedding_dim (128)
    assert w1.shape[0] == F and w2.shape[0] == H
    assert w3.shape == (E, 1) and b3.shape == (1,)

    # Batch tiling: keep tiles MXU-row aligned; pad the batch so it divides.
    bt = min(_round_up(batch_tile, _SUBLANES), _round_up(B, _SUBLANES))
    Bp = _round_up(B, bt)
    if Bp != B:
        x = jnp.pad(x, ((0, Bp - B), (0, 0)))

    # Cast MXU operands once here (not per grid step inside the kernel).
    x_c = x.astype(compute_dtype)
    w1_c = jnp.asarray(w1, compute_dtype)
    w2_c = jnp.asarray(w2, compute_dtype)

    # Biases / head weights stay f32 (v5e VPU has no native bf16 path).
    b1_2d = jnp.asarray(b1, jnp.float32).reshape(1, H)
    b2_2d = jnp.asarray(b2, jnp.float32).reshape(1, E)
    w3_row = jnp.asarray(w3, jnp.float32).reshape(1, E)   # head weight as a row
    b3_s = jnp.asarray(b3, jnp.float32).reshape(1)        # scalar via SMEM

    grid = (Bp // bt,)

    # TODO(synk): for very large num_features, add a K-tiling ("arbitrary")
    # grid axis over F with a VMEM accumulator for h instead of loading the
    # full (F, 256) weight block per step.

    out = pl.pallas_call(
        _mlp_head_kernel,
        out_shape=jax.ShapeDtypeStruct((Bp, _LANES), jnp.float32),
        grid_spec=pltpu.PrefetchScalarGridSpec(
            num_scalar_prefetch=0,
            grid=grid,
            in_specs=[
                pl.BlockSpec((bt, F), lambda i: (i, 0)),            # x tile
                pl.BlockSpec((F, H), lambda i: (0, 0)),             # w1 (resident)
                pl.BlockSpec((1, H), lambda i: (0, 0)),             # b1
                pl.BlockSpec((H, E), lambda i: (0, 0)),             # w2 (resident)
                pl.BlockSpec((1, E), lambda i: (0, 0)),             # b2
                pl.BlockSpec((1, E), lambda i: (0, 0)),             # w3 row
                pl.BlockSpec(memory_space=pltpu.MemorySpace.SMEM),  # b3 scalar
            ],
            out_specs=pl.BlockSpec((bt, _LANES), lambda i: (i, 0)),
        ),
        compiler_params=pltpu.CompilerParams(
            dimension_semantics=("parallel",),
        ),
    )(x_c, w1_c, b1_2d, w2_c, b2_2d, w3_row, b3_s)

    return out[:B, :1]


def init_params(key, num_features, embedding_dim=128):
    """Deterministic init mirroring nn.Linear default (uniform +-1/sqrt(fan_in)).
    Weights are stored as (in_features, out_features)."""
    k1, k2, k3, k4, k5, k6 = jax.random.split(key, 6)
    H = 256

    def lin_init(kw, kb, fan_in, fan_out):
        bound = 1.0 / jnp.sqrt(fan_in)
        w = jax.random.uniform(kw, (fan_in, fan_out), jnp.float32, -bound, bound)
        b = jax.random.uniform(kb, (fan_out,), jnp.float32, -bound, bound)
        return w, b

    w1, b1 = lin_init(k1, k2, num_features, H)
    w2, b2 = lin_init(k3, k4, H, embedding_dim)
    w3, b3 = lin_init(k5, k6, embedding_dim, 1)
    return w1, b1, w2, b2, w3, b3


def reference_forward(x, w1, b1, w2, b2, w3, b3, compute_dtype=jnp.float32):
    cd = compute_dtype
    h = jnp.dot(x.astype(cd), w1.astype(cd),
                preferred_element_type=jnp.float32) + b1
    h = jnp.maximum(h, 0.0)
    e = jnp.dot(h.astype(cd), w2.astype(cd),
                preferred_element_type=jnp.float32) + b2
    return jnp.dot(e, w3.astype(jnp.float32)) + b3


if __name__ == "__main__":
    key = jax.random.PRNGKey(0)
    kx, kp = jax.random.split(key)

    batch = 8
    num_features = 32
    embedding_dim = 128

    x = jax.random.normal(kx, (batch, num_features), dtype=jnp.float32)
    params = init_params(kp, num_features, embedding_dim)

    # Default path: bf16 MXU feed, f32 accumulation.
    out = jax.block_until_ready(encoder_with_head(x, *params))
    assert out.shape == (batch, 1), out.shape

    ref_bf16 = reference_forward(x, *params, compute_dtype=jnp.bfloat16)
    assert jnp.allclose(out, ref_bf16, atol=2e-3, rtol=2e-3), (
        float(jnp.max(jnp.abs(out - ref_bf16))))

    ref_f32 = reference_forward(x, *params)
    assert jnp.allclose(out, ref_f32, atol=5e-2, rtol=5e-2), (
        float(jnp.max(jnp.abs(out - ref_f32))))

    # Exercise batch padding + multi-tile grid with exact f32 compute.
    batch2 = 300
    x2 = jax.random.normal(jax.random.PRNGKey(1), (batch2, num_features),
                           dtype=jnp.float32)
    out2 = jax.block_until_ready(
        encoder_with_head(x2, *params, compute_dtype=jnp.float32))
    ref2 = reference_forward(x2, *params)
    assert out2.shape == (batch2, 1), out2.shape
    assert jnp.allclose(out2, ref2, atol=1e-4, rtol=1e-4), (
        float(jnp.max(jnp.abs(out2 - ref2))))

    print("KERNEL_OK")
</pallas_src>

<mosaic_0001>
module attributes {stable_mosaic.version = 11 : i64} {
  func.func @_mlp_head_kernel(%arg0: i32, %arg1: memref<16x32xbf16, #tpu.memory_space<vmem>>, %arg2: memref<32x256xbf16, #tpu.memory_space<vmem>>, %arg3: memref<1x256xf32, #tpu.memory_space<vmem>>, %arg4: memref<256x128xbf16, #tpu.memory_space<vmem>>, %arg5: memref<1x128xf32, #tpu.memory_space<vmem>>, %arg6: memref<1x128xf32, #tpu.memory_space<vmem>>, %arg7: memref<1xf32, #tpu.memory_space<smem>>, %arg8: memref<16x128xf32, #tpu.memory_space<vmem>>) attributes {dimension_semantics = [#tpu.dimension_semantics<parallel>], iteration_bounds = array<i64: 1>, scalar_prefetch = 0 : i64, scratch_operands = 0 : i64, tpu.core_type = #tpu.core_type<tc>, window_params = [{transform_indices = @transform_0, window_bounds = array<i64: 16, 32>}, {pipeline_mode = #tpu.pipeline_mode<synchronous>, transform_indices = @transform_1, window_bounds = array<i64: 32, 256>}, {pipeline_mode = #tpu.pipeline_mode<synchronous>, transform_indices = @transform_2, window_bounds = array<i64: 1, 256>}, {pipeline_mode = #tpu.pipeline_mode<synchronous>, transform_indices = @transform_3, window_bounds = array<i64: 256, 128>}, {pipeline_mode = #tpu.pipeline_mode<synchronous>, transform_indices = @transform_4, window_bounds = array<i64: 1, 128>}, {pipeline_mode = #tpu.pipeline_mode<synchronous>, transform_indices = @transform_5, window_bounds = array<i64: 1, 128>}, {transform_indices = @transform_6, window_bounds = array<i64: 1>}, {transform_indices = @transform_7, window_bounds = array<i64: 16, 128>}]} {
    %c0 = arith.constant 0 : index
    %c0_0 = arith.constant 0 : index
    %0 = vector.load %arg1[%c0, %c0_0] : memref<16x32xbf16, #tpu.memory_space<vmem>>, vector<16x32xbf16>
    %c0_1 = arith.constant 0 : index
    %c0_2 = arith.constant 0 : index
    %1 = vector.load %arg2[%c0_1, %c0_2] : memref<32x256xbf16, #tpu.memory_space<vmem>>, vector<32x256xbf16>
    %cst = arith.constant dense<0.000000e+00> : vector<16x256xf32>
    %2 = tpu.matmul %0, %1, %cst {dimension_numbers = #tpu.dot_dimension_numbers<[1], [0], [0], [1], [0, 0, 1, 1], [], []>} : vector<16x32xbf16>, vector<32x256xbf16>, vector<16x256xf32> -> vector<16x256xf32>
    %c0_3 = arith.constant 0 : index
    %c0_4 = arith.constant 0 : index
    %3 = vector.load %arg3[%c0_3, %c0_4] : memref<1x256xf32, #tpu.memory_space<vmem>>, vector<1x256xf32>
    %4 = vector.broadcast %3 : vector<1x256xf32> to vector<16x256xf32>
    %5 = arith.addf %2, %4 : vector<16x256xf32>
    %cst_5 = arith.constant 0.000000e+00 : f32
    %6 = vector.broadcast %cst_5 : f32 to vector<16x256xf32>
    %7 = arith.maximumf %5, %6 : vector<16x256xf32>
    %8 = arith.truncf %7 : vector<16x256xf32> to vector<16x256xbf16>
    %c0_6 = arith.constant 0 : index
    %c0_7 = arith.constant 0 : index
    %9 = vector.load %arg4[%c0_6, %c0_7] : memref<256x128xbf16, #tpu.memory_space<vmem>>, vector<256x128xbf16>
    %cst_8 = arith.constant dense<0.000000e+00> : vector<16x128xf32>
    %10 = tpu.matmul %8, %9, %cst_8 {dimension_numbers = #tpu.dot_dimension_numbers<[1], [0], [0], [1], [0, 0, 1, 1], [], []>} : vector<16x256xbf16>, vector<256x128xbf16>, vector<16x128xf32> -> vector<16x128xf32>
    %c0_9 = arith.constant 0 : index
    %c0_10 = arith.constant 0 : index
    %11 = vector.load %arg5[%c0_9, %c0_10] : memref<1x128xf32, #tpu.memory_space<vmem>>, vector<1x128xf32>
    %12 = vector.broadcast %11 : vector<1x128xf32> to vector<16x128xf32>
    %13 = arith.addf %10, %12 : vector<16x128xf32>
    %c0_11 = arith.constant 0 : index
    %c0_12 = arith.constant 0 : index
    %14 = vector.load %arg6[%c0_11, %c0_12] : memref<1x128xf32, #tpu.memory_space<vmem>>, vector<1x128xf32>
    %15 = vector.broadcast %14 : vector<1x128xf32> to vector<16x128xf32>
    %16 = arith.mulf %13, %15 : vector<16x128xf32>
    %cst_13 = arith.constant dense<0.000000e+00> : vector<16xf32>
    %17 = vector.multi_reduction <add>, %16, %cst_13 [1] : vector<16x128xf32> to vector<16xf32>
    %18 = vector.shape_cast %17 : vector<16xf32> to vector<16x1xf32>
    %c0_14 = arith.constant 0 : index
    %19 = memref.load %arg7[%c0_14] : memref<1xf32, #tpu.memory_space<smem>>
    %20 = vector.broadcast %19 : f32 to vector<16x1xf32>
    %21 = arith.addf %18, %20 : vector<16x1xf32>
    %22 = vector.shape_cast %21 : vector<16x1xf32> to vector<16x1xf32>
    %23 = vector.broadcast %22 : vector<16x1xf32> to vector<16x128xf32>
    %c0_15 = arith.constant 0 : index
    %c0_16 = arith.constant 0 : index
    %24 = vector.load %arg8[%c0_15, %c0_16] : memref<16x128xf32, #tpu.memory_space<vmem>>, vector<16x128xf32>
    tpu.vector_store %arg8[%c0_15, %c0_16], %23 {strides = array<i32>} : memref<16x128xf32, #tpu.memory_space<vmem>>, vector<16x128xf32>,
    return
  }
  func.func @transform_0(%arg0: i32) -> (i32, i32) {
    %c0_i32 = arith.constant 0 : i32
    %c0_i32_0 = arith.constant 0 : i32
    return %arg0, %c0_i32 : i32, i32
  }
  func.func @transform_1(%arg0: i32) -> (i32, i32) {
    %c0_i32 = arith.constant 0 : i32
    %c0_i32_0 = arith.constant 0 : i32
    %c0_i32_1 = arith.constant 0 : i32
    return %c0_i32, %c0_i32_0 : i32, i32
  }
  func.func @transform_2(%arg0: i32) -> (i32, i32) {
    %c0_i32 = arith.constant 0 : i32
    %c0_i32_0 = arith.constant 0 : i32
    %c0_i32_1 = arith.constant 0 : i32
    return %c0_i32, %c0_i32_0 : i32, i32
  }
  func.func @transform_3(%arg0: i32) -> (i32, i32) {
    %c0_i32 = arith.constant 0 : i32
    %c0_i32_0 = arith.constant 0 : i32
    %c0_i32_1 = arith.constant 0 : i32
    return %c0_i32, %c0_i32_0 : i32, i32
  }
  func.func @transform_4(%arg0: i32) -> (i32, i32) {
    %c0_i32 = arith.constant 0 : i32
    %c0_i32_0 = arith.constant 0 : i32
    %c0_i32_1 = arith.constant 0 : i32
    return %c0_i32, %c0_i32_0 : i32, i32
  }
  func.func @transform_5(%arg0: i32) -> (i32, i32) {
    %c0_i32 = arith.constant 0 : i32
    %c0_i32_0 = arith.constant 0 : i32
    %c0_i32_1 = arith.constant 0 : i32
    return %c0_i32, %c0_i32_0 : i32, i32
  }
  func.func @transform_6(%arg0: i32) -> i32 {
    %c0_i32 = arith.constant 0 : i32
    %c0_i32_0 = arith.constant 0 : i32
    return %c0_i32 : i32
  }
  func.func @transform_7(%arg0: i32) -> (i32, i32) {
    %c0_i32 = arith.constant 0 : i32
    %c0_i32_0 = arith.constant 0 : i32
    return %arg0, %c0_i32 : i32, i32
  }
}

</mosaic_0001>

<llo_original>
// kernel: tpu_custom_call.1
$region0: #{tpu_custom_call.1}
  #allocation0 [shape = 'u32[]', space=smem, size = 0x4, offset = 0x4, fixed_abs, tag = 'smem constant byte address 0x4 - core index']
  #allocation1 [shape = 'u32[72,128]{1,0:T(1,128)}', space=vmem, size = 0x9000, scoped, tag = 'internal scratch']
  #allocation2 [shape = 'f32[1]{0:T(128)S(6)}', space=smem, size = 0x200, scoped, tag = 'scoped memory for tpu_custom_call.1']
  %s0 = inlined_call_operand.hbm [shape: bf16[16,32], index: 0, kind: input, shape index: {}]
  %s1 = inlined_call_operand.hbm [shape: bf16[32,256], index: 1, kind: input, shape index: {}]
  %s2 = inlined_call_operand.vmem [shape: f32[1,256], index: 2, kind: input, shape index: {}]
  %s3 = inlined_call_operand.hbm [shape: bf16[256,128], index: 3, kind: input, shape index: {}]
  %s4 = inlined_call_operand.vmem [shape: f32[1,128], index: 4, kind: input, shape index: {}]
  %s5 = inlined_call_operand.vmem [shape: f32[1,128], index: 5, kind: input, shape index: {}]
  %s6 = inlined_call_operand.<no memory space> [shape: f32[1], index: 6, kind: input, shape index: {}]
  %s7 = inlined_call_operand.hbm [shape: f32[16,128], index: 7, kind: output, shape index: {}]
  %s8 = sld [smem:[#allocation0]]
  $region50: #{tpu_custom_call.1} parent=0
    _
  %s10 = ssub.s32 1, %s8
  %s11 = scalar_select 0, %s10, %s8
  %12 = sst [smem:[#allocation2]] %s6
  $region1: #{tpu_custom_call.1} parent=0
    #allocation3 [shape = 'u8[4096]{0}', space=vmem, size = 0x1000, scoped, tag = 'input window, operand 0, single buffered']
    #allocation4 [shape = 's32[1]{0}', space=sflag, size = 0x4, scoped, tag = 'scoped memory for tpu_custom_call.1']
    #allocation5 [shape = 's32[1]{0}', space=sflag, size = 0x4, scoped, tag = 'scoped memory for tpu_custom_call.1']
    #allocation6 [shape = 'u8[16384]{0}', space=vmem, size = 0x4000, scoped, tag = 'input window, operand 1, single buffered']
    #allocation7 [shape = 's32[1]{0}', space=sflag, size = 0x4, scoped, tag = 'scoped memory for tpu_custom_call.1']
    #allocation8 [shape = 'u8[65536]{0}', space=vmem, size = 0x10000, scoped, tag = 'input window, operand 3, single buffered']
    #allocation9 [shape = 'u8[8192]{0}', space=vmem, size = 0x2000, scoped, tag = 'output window, operand 0, single buffered']
    %13 = vsyncpa [#allocation4], 0
    %14 = vsyncpa [#allocation7], 0
    %15 = vsyncpa [#allocation5], 0
    // Predicated region
    $region2: #{tpu_custom_call.1} parent=1 // pred_check
      _
    $region3: #{tpu_custom_call.1} parent=1 // pred_check_branch
      %17 = sbr.rel (0) target = $region5
    $region4: #{tpu_custom_call.1} parent=1 // pred_region
      %19 = vsyncadd [#allocation4], 0
      %s20 = sshll.u32 %s0, 4
      %s21 = int_to_ptr.hbm [resolvable:$true] %s20
      %s22 = sshll.u32 [#allocation3], 4
      %s23 = int_to_ptr.vmem [resolvable:$true] %s22
      %28 = dma.hbm_to_vmem [thread:$0]  %s21, 128, %s23, [#allocation4], 64, 64, 4
    $region5: #{tpu_custom_call.1} parent=1 // pred_fallthru
      _
    // Predicated region
    $region6: #{tpu_custom_call.1} parent=1 // pred_check
      _
    $region7: #{tpu_custom_call.1} parent=1 // pred_check_branch
      %30 = sbr.rel (0) target = $region9
    $region8: #{tpu_custom_call.1} parent=1 // pred_region
      %32 = vsyncadd [#allocation7], 0
      %s33 = sshll.u32 %s1, 4
      %s34 = int_to_ptr.hbm [resolvable:$true] %s33
      %s35 = sshll.u32 [#allocation6], 4
      %s36 = int_to_ptr.vmem [resolvable:$true] %s35
      %41 = dma.hbm_to_vmem [thread:$0]  %s34, 512, %s36, [#allocation7], 128, 128, 8
    $region9: #{tpu_custom_call.1} parent=1 // pred_fallthru
      _
    // Predicated region
    $region10: #{tpu_custom_call.1} parent=1 // pred_check
      _
    $region11: #{tpu_custom_call.1} parent=1 // pred_check_branch
      %43 = sbr.rel (0) target = $region13
    $region12: #{tpu_custom_call.1} parent=1 // pred_region
      _
    $region13: #{tpu_custom_call.1} parent=1 // pred_fallthru
      _
    // Predicated region
    $region14: #{tpu_custom_call.1} parent=1 // pred_check
      _
    $region15: #{tpu_custom_call.1} parent=1 // pred_check_branch
      %45 = sbr.rel (0) target = $region17
    $region16: #{tpu_custom_call.1} parent=1 // pred_region
      %47 = vsyncadd [#allocation7], 0
      %s48 = sshll.u32 %s3, 4
      %s49 = int_to_ptr.hbm [resolvable:$true] %s48
      %s50 = sshll.u32 [#allocation8], 4
      %s51 = int_to_ptr.vmem [resolvable:$true] %s50
      %56 = dma.hbm_to_vmem [thread:$0]  %s49, 2048, %s51, [#allocation7], 64, 64, 4
    $region17: #{tpu_custom_call.1} parent=1 // pred_fallthru
      _
    // Predicated region
    $region18: #{tpu_custom_call.1} parent=1 // pred_check
      _
    $region19: #{tpu_custom_call.1} parent=1 // pred_check_branch
      %58 = sbr.rel (0) target = $region21
    $region20: #{tpu_custom_call.1} parent=1 // pred_region
      _
    $region21: #{tpu_custom_call.1} parent=1 // pred_fallthru
      _
    // Predicated region
    $region22: #{tpu_custom_call.1} parent=1 // pred_check
      _
    $region23: #{tpu_custom_call.1} parent=1 // pred_check_branch
      %60 = sbr.rel (0) target = $region25
    $region24: #{tpu_custom_call.1} parent=1 // pred_region
      _
    $region25: #{tpu_custom_call.1} parent=1 // pred_fallthru
      _
    // Predicated region
    $region26: #{tpu_custom_call.1} parent=1 // pred_check
      _
    $region27: #{tpu_custom_call.1} parent=1 // pred_check_branch
      %62 = sbr.rel (0) target = $region29
    $region28: #{tpu_custom_call.1} parent=1 // pred_region
      _
    $region29: #{tpu_custom_call.1} parent=1 // pred_fallthru
      _
    // Predicated region
    $region30: #{tpu_custom_call.1} parent=1 // pred_check
      _
    $region31: #{tpu_custom_call.1} parent=1 // pred_check_branch
      %64 = sbr.rel (0) target = $region33
    $region32: #{tpu_custom_call.1} parent=1 // pred_region
      %66 = dma.done [#allocation4], 128
    $region33: #{tpu_custom_call.1} parent=1 // pred_fallthru
      _
    // Predicated region
    $region34: #{tpu_custom_call.1} parent=1 // pred_check
      _
    $region35: #{tpu_custom_call.1} parent=1 // pred_check_branch
      %68 = sbr.rel (0) target = $region37
    $region36: #{tpu_custom_call.1} parent=1 // pred_region
      %70 = dma.done [#allocation7], 512
    $region37: #{tpu_custom_call.1} parent=1 // pred_fallthru
      _
    // Predicated region
    $region38: #{tpu_custom_call.1} parent=1 // pred_check
      _
    $region39: #{tpu_custom_call.1} parent=1 // pred_check_branch
      %72 = sbr.rel (0) target = $region41
    $region40: #{tpu_custom_call.1} parent=1 // pred_region
      %74 = dma.done [#allocation7], 2048
    $region41: #{tpu_custom_call.1} parent=1 // pred_fallthru
      _
    %v76 = vld [vmem:[#allocation3] sm:$0xf]
    %v77 = vld [vmem:[#allocation3 + $0x4] sm:$0xf]
    %v78 = vld [vmem:[#allocation6] sm:$0xff]
    %v79 = vld [vmem:[#allocation6 + $0x8] sm:$0xff]
    %v80 = vld [vmem:[#allocation6 + $0x10] sm:$0xff]
    %v81 = vld [vmem:[#allocation6 + $0x18] sm:$0xff]
    %v82 = vld [vmem:[%s2] sm:$0x3]
    %v84 = vperm.slane %v82, 0
    %v85 = vperm.slane %v82, 1
    %v90 = vunpack.c.l.b16 %v76
    %v91 = vunpack.c.l.b16 %v77
    %v92 = vpack.c.b16 %v91, %v90
    %v97 = vunpack.c.l.b16 %v78
    %v98 = vunpack.c.h.b16 %v78
    %v99 = vunpack.c.l.b16 %v79
    %v100 = vunpack.c.h.b16 %v79
    %v101 = vunpack.c.l.b16 %v80
    %v102 = vunpack.c.h.b16 %v80
    %v103 = vunpack.c.l.b16 %v81
    %v104 = vunpack.c.h.b16 %v81
    %v105 = vpack.c.b16 %v99, %v97
    %v106 = vpack.c.b16 %v100, %v98
    %v107 = vpack.c.b16 %v103, %v101
    %v108 = vpack.c.b16 %v104, %v102
    %vm113 = vcmask 261120
    %v115 = vsel %vm113, %v92, 0
    %117 = vmatpush.bf16.msra.mxu0 0
    %118 = vmatpush.bf16.msra.mxu0 0
    %119 = vmatpush.bf16.msra.mxu0 0
    %120 = vmatpush.bf16.msra.mxu0 0
    %121 = vmatpush.bf16.msra.mxu0 0
    %122 = vmatpush.bf16.msra.mxu0 0
    %123 = vmatpush.bf16.msra.mxu0 %v107
    %124 = vmatpush.bf16.msra.mxu0 %v105
    %125 = vmatmul.bf16.gmra.mxu0 %v115
    %v126 = vpop.f32.mrf.mxu0
    %v127 = vadd.f32 %v84, %v126
    %v128 = vpop.f32.mrf.mxu0
    %v129 = vadd.f32 %v84, %v128
    %130 = vdwg.mxu0
    %131 = vmatpush.bf16.msra.mxu0 0
    %132 = vmatpush.bf16.msra.mxu0 0
    %133 = vmatpush.bf16.msra.mxu0 0
    %134 = vmatpush.bf16.msra.mxu0 0
    %135 = vmatpush.bf16.msra.mxu0 0
    %136 = vmatpush.bf16.msra.mxu0 0
    %137 = vmatpush.bf16.msra.mxu0 %v108
    %138 = vmatpush.bf16.msra.mxu0 %v106
    %139 = vmatmul.bf16.gmra.mxu0 %v115
    %v140 = vpop.f32.mrf.mxu0
    %v141 = vadd.f32 %v85, %v140
    %v142 = vpop.f32.mrf.mxu0
    %v143 = vadd.f32 %v85, %v142
    %144 = vdwg.mxu0
    %v145 = vmax.f32 %v127, 0.0
    %v146 = vmax.f32 %v141, 0.0
    %v147 = vmax.f32 %v129, 0.0
    %v148 = vmax.f32 %v143, 0.0
    %v149 = vpack.c.bf16 %v147, %v145
    %v150 = vpack.c.bf16 %v148, %v146
    %v151 = vld [vmem:[#allocation8] sm:$0xf]
    %v152 = vld [vmem:[#allocation8 + $0x4] sm:$0xf]
    %v153 = vld [vmem:[#allocation8 + $0x8] sm:$0xf]
    %v154 = vld [vmem:[#allocation8 + $0xc] sm:$0xf]
    %v155 = vld [vmem:[#allocation8 + $0x10] sm:$0xf]
    %v156 = vld [vmem:[#allocation8 + $0x14] sm:$0xf]
    %v157 = vld [vmem:[#allocation8 + $0x18] sm:$0xf]
    %v158 = vld [vmem:[#allocation8 + $0x1c] sm:$0xf]
    %v159 = vld [vmem:[#allocation8 + $0x20] sm:$0xf]
    %v160 = vld [vmem:[#allocation8 + $0x24] sm:$0xf]
    %v161 = vld [vmem:[#allocation8 + $0x28] sm:$0xf]
    %v162 = vld [vmem:[#allocation8 + $0x2c] sm:$0xf]
    %v163 = vld [vmem:[#allocation8 + $0x30] sm:$0xf]
    %v164 = vld [vmem:[#allocation8 + $0x34] sm:$0xf]
    %v165 = vld [vmem:[#allocation8 + $0x38] sm:$0xf]
    %v166 = vld [vmem:[#allocation8 + $0x3c] sm:$0xf]
    %v167 = vld [vmem:[#allocation8 + $0x40] sm:$0xf]
    %v168 = vld [vmem:[#allocation8 + $0x44] sm:$0xf]
    %v169 = vld [vmem:[#allocation8 + $0x48] sm:$0xf]
    %v170 = vld [vmem:[#allocation8 + $0x4c] sm:$0xf]
    %v171 = vld [vmem:[#allocation8 + $0x50] sm:$0xf]
    %v172 = vld [vmem:[#allocation8 + $0x54] sm:$0xf]
    %v173 = vld [vmem:[#allocation8 + $0x58] sm:$0xf]
    %v174 = vld [vmem:[#allocation8 + $0x5c] sm:$0xf]
    %v175 = vld [vmem:[#allocation8 + $0x60] sm:$0xf]
    %v176 = vld [vmem:[#allocation8 + $0x64] sm:$0xf]
    %v177 = vld [vmem:[#allocation8 + $0x68] sm:$0xf]
    %v178 = vld [vmem:[#allocation8 + $0x6c] sm:$0xf]
    %v179 = vld [vmem:[#allocation8 + $0x70] sm:$0xf]
    %v180 = vld [vmem:[#allocation8 + $0x74] sm:$0xf]
    %v181 = vld [vmem:[#allocation8 + $0x78] sm:$0xf]
    %v182 = vld [vmem:[#allocation8 + $0x7c] sm:$0xf]
    %v183 = vld [vmem:[%s4] sm:$0x1]
    %v185 = vperm.slane %v183, 0
    %v219 = vunpack.c.l.b16 %v151
    %v220 = vunpack.c.l.b16 %v152
    %v221 = vunpack.c.l.b16 %v153
    %v222 = vunpack.c.l.b16 %v154
    %v223 = vunpack.c.l.b16 %v155
    %v224 = vunpack.c.l.b16 %v156
    %v225 = vunpack.c.l.b16 %v157
    %v226 = vunpack.c.l.b16 %v158
    %v227 = vunpack.c.l.b16 %v159
    %v228 = vunpack.c.l.b16 %v160
    %v229 = vunpack.c.l.b16 %v161
    %v230 = vunpack.c.l.b16 %v162
    %v231 = vunpack.c.l.b16 %v163
    %v232 = vunpack.c.l.b16 %v164
    %v233 = vunpack.c.l.b16 %v165
    %v234 = vunpack.c.l.b16 %v166
    %v235 = vunpack.c.l.b16 %v167
    %v236 = vunpack.c.l.b16 %v168
    %v237 = vunpack.c.l.b16 %v169
    %v238 = vunpack.c.l.b16 %v170
    %v239 = vunpack.c.l.b16 %v171
    %v240 = vunpack.c.l.b16 %v172
    %v241 = vunpack.c.l.b16 %v173
    %v242 = vunpack.c.l.b16 %v174
    %v243 = vunpack.c.l.b16 %v175
    %v244 = vunpack.c.l.b16 %v176
    %v245 = vunpack.c.l.b16 %v177
    %v246 = vunpack.c.l.b16 %v178
    %v247 = vunpack.c.l.b16 %v179
    %v248 = vunpack.c.l.b16 %v180
    %v249 = vunpack.c.l.b16 %v181
    %v250 = vunpack.c.l.b16 %v182
    %v251 = vpack.c.b16 %v220, %v219
    %v252 = vpack.c.b16 %v222, %v221
    %v253 = vpack.c.b16 %v224, %v223
    %v254 = vpack.c.b16 %v226, %v225
    %v255 = vpack.c.b16 %v228, %v227
    %v256 = vpack.c.b16 %v230, %v229
    %v257 = vpack.c.b16 %v232, %v231
    %v258 = vpack.c.b16 %v234, %v233
    %v259 = vpack.c.b16 %v236, %v235
    %v260 = vpack.c.b16 %v238, %v237
    %v261 = vpack.c.b16 %v240, %v239
    %v262 = vpack.c.b16 %v242, %v241
    %v263 = vpack.c.b16 %v244, %v243
    %v264 = vpack.c.b16 %v246, %v245
    %v265 = vpack.c.b16 %v248, %v247
    %v266 = vpack.c.b16 %v250, %v249
    %283 = vmatpush.bf16.msra.mxu0 %v258
    %284 = vmatpush.bf16.msra.mxu0 %v257
    %285 = vmatpush.bf16.msra.mxu0 %v256
    %286 = vmatpush.bf16.msra.mxu0 %v255
    %287 = vmatpush.bf16.msra.mxu0 %v254
    %288 = vmatpush.bf16.msra.mxu0 %v253
    %289 = vmatpush.bf16.msra.mxu0 %v252
    %290 = vmatpush.bf16.msra.mxu0 %v251
    %291 = vmatmul.bf16.gmra.mxu0 %v149
    %v292 = vpop.f32.mrf.mxu0
    %v293 = vadd.f32 %v185, %v292
    %v294 = vpop.f32.mrf.mxu0
    %v295 = vadd.f32 %v185, %v294
    %296 = vdwg.mxu0
    %297 = vmatpush.bf16.msra.mxu0 %v266
    %298 = vmatpush.bf16.msra.mxu0 %v265
    %299 = vmatpush.bf16.msra.mxu0 %v264
    %300 = vmatpush.bf16.msra.mxu0 %v263
    %301 = vmatpush.bf16.msra.mxu0 %v262
    %302 = vmatpush.bf16.msra.mxu0 %v261
    %303 = vmatpush.bf16.msra.mxu0 %v260
    %304 = vmatpush.bf16.msra.mxu0 %v259
    %305 = vmatmul.bf16.gmra.mxu0 %v150
    %v306 = vpop.f32.mrf.mxu0
    %v307 = vadd.f32 %v293, %v306
    %v308 = vpop.f32.mrf.mxu0
    %v309 = vadd.f32 %v295, %v308
    %310 = vdwg.mxu0
    %v311 = vld [vmem:[%s5] sm:$0x1]
    %v313 = vperm.slane %v311, 0
    %v315 = vmul.f32 %v307, %v313
    %v316 = vmul.f32 %v309, %v313
    %317 = vadd.xlane.f32.xlu0 %v315
    %v318 = vpop.xlane.xlu0 %317
    %319 = vadd.xlane.f32.xlu0 %v316
    %v320 = vpop.xlane.xlu0 %319
    %s321 = sld [smem:[#allocation2]]
    %v322 = vstv %s321
    %v323 = vadd.f32 %v318, %v322
    %v324 = vadd.f32 %v320, %v322
    %325 = vst [vmem:[#allocation9] sm:$0xff] %v323
    %326 = vst [vmem:[#allocation9 + $0x8] sm:$0xff] %v324
    // Predicated region
    $region42: #{tpu_custom_call.1} parent=1 // pred_check
      _
    $region43: #{tpu_custom_call.1} parent=1 // pred_check_branch
      %328 = sbr.rel (0) target = $region45
    $region44: #{tpu_custom_call.1} parent=1 // pred_region
      %330 = vsyncadd [#allocation5], 0
      %s331 = sshll.u32 [#allocation9], 4
      %s332 = int_to_ptr.vmem [resolvable:$true] %s331
      %s333 = sshll.u32 %s7, 4
      %s334 = int_to_ptr.hbm [resolvable:$true] %s333
      %339 = dma.vmem_to_hbm [thread:$0]  %s332, 256, %s334, [#allocation5], 128, 128, 8
    $region45: #{tpu_custom_call.1} parent=1 // pred_fallthru
      _
    // Predicated region
    $region46: #{tpu_custom_call.1} parent=1 // pred_check
      _
    $region47: #{tpu_custom_call.1} parent=1 // pred_check_branch
      %341 = sbr.rel (0) target = $region49
    $region48: #{tpu_custom_call.1} parent=1 // pred_region
      %343 = dma.done [#allocation5], 256
    $region49: #{tpu_custom_call.1} parent=1 // pred_fallthru
      _
    %344 = vsyncpa [#allocation4], 1
    %345 = vsyncpa [#allocation7], 1
    %346 = vsyncpa [#allocation5], 1

</llo_original>
